<compile_context>
chip_gen: v7x
topology: tpu7x:2x2x1
jax: 0.10.0
libtpu: 0.0.40
codegen_flags: <defaults>
</compile_context>

<pallas_src>
import jax
import jax.numpy as jnp
from jax.experimental import pallas as pl
from jax.experimental.pallas import tpu as pltpu

_LANE = 128


def _round_up(x, m):
    return ((x + m - 1) // m) * m


def _ceil_div(a, b):
    return -(-a // b)


def _make_mlp_kernel(out_pads):
    """out_pads: padded output width of each of the 5 layers."""

    def kernel(x_ref, w1_ref, w2_ref, w3_ref, w4_ref, w5_ref, b_ref, o_ref):
        w_refs = (w1_ref, w2_ref, w3_ref, w4_ref, w5_ref)
        h = x_ref[...]  # already bf16, streamed as bf16 from HBM
        for i, (w_ref, d_out) in enumerate(zip(w_refs, out_pads)):
            # bf16 x bf16 matmul on the MXU with f32 accumulation.
            y = jnp.dot(h, w_ref[...], preferred_element_type=jnp.float32)
            # Bias-add (+ ReLU for layers 1-4) in f32 (v5e VPU has no bf16).
            y = y + b_ref[i:i + 1, :d_out]
            if i < 4:
                y = jnp.maximum(y, 0.0)
            # Single cast per layer: keep inter-layer activations in bf16.
            h = y.astype(jnp.bfloat16)
        o_ref[...] = h  # bf16 store, lane-dense (d_out_pad multiple of 128)

    return kernel


def fully_connected_policy_estimator(x, params, num_states, num_actions,
                                     *, block_batch=512):
    """x: [batch, num_states] float32. Returns [batch, num_actions] float32."""
    batch = x.shape[0]
    w_list = [params[f"w{k}"] for k in range(1, 6)]
    b_all = params["b_all"]
    d_in_pad = w_list[0].shape[0]
    out_pads = tuple(int(w.shape[1]) for w in w_list)
    d_out_pad = out_pads[-1]

    # bf16 activations -> min sublane tile is 16.
    padded16 = _round_up(batch, 16)
    num_tiles = max(1, _ceil_div(padded16, block_batch))
    # v7x: keep at least 2 grid steps when the batch allows it so the
    # "parallel" batch axis can shard across both TensorCores.
    if num_tiles < 2 and padded16 >= 32:
        num_tiles = 2
    # Balanced tiles (minimise dead rows in the last tile).
    tb = _round_up(_ceil_div(padded16, num_tiles), 16)
    padded_batch = tb * num_tiles

    # Zero-pad batch + feature axes, cast to bf16 on the wrapper side.
    x_p = jnp.zeros((padded_batch, d_in_pad), jnp.bfloat16)
    x_p = x_p.at[:batch, :num_states].set(x.astype(jnp.bfloat16))

    in_specs = [pl.BlockSpec((tb, d_in_pad), lambda i: (i, 0))]
    for w in w_list:
        # Constant index_map -> parameters stay VMEM-resident across steps.
        in_specs.append(pl.BlockSpec(w.shape, lambda i: (0, 0)))
    in_specs.append(pl.BlockSpec(b_all.shape, lambda i: (0, 0)))

    out_spec = pl.BlockSpec((tb, d_out_pad), lambda i: (i, 0))

    out_padded = pl.pallas_call(
        _make_mlp_kernel(out_pads),
        out_shape=jax.ShapeDtypeStruct((padded_batch, d_out_pad), jnp.bfloat16),
        grid=(num_tiles,),
        in_specs=in_specs,
        out_specs=out_spec,
        compiler_params=pltpu.CompilerParams(
            dimension_semantics=("parallel",)),
    )(x_p, *w_list, b_all)

    return out_padded[:batch, :num_actions].astype(jnp.float32)


def init_params(key, num_states, num_actions):
    """PyTorch nn.Linear default init U(+-1/sqrt(fan_in)), stored padded:
    weights [in_pad, out_pad] bf16 (zero-padded); biases packed into a single
    f32 array b_all[8, max_out_pad] (row k = bias of layer k+1)."""
    dims = [num_states, 100, 200, 200, 100, num_actions]
    dims_pad = [_round_up(d, _LANE) for d in dims]
    max_out_pad = max(dims_pad[1:])
    params = {}
    b_rows = []
    for i in range(5):
        fan_in, fan_out = dims[i], dims[i + 1]
        fi_p, fo_p = dims_pad[i], dims_pad[i + 1]
        key, kw, kb = jax.random.split(key, 3)
        bound = float(fan_in) ** -0.5
        w = jax.random.uniform(kw, (fan_in, fan_out), jnp.float32, -bound, bound)
        b = jax.random.uniform(kb, (fan_out,), jnp.float32, -bound, bound)
        w_pad = jnp.zeros((fi_p, fo_p), jnp.float32).at[:fan_in, :fan_out].set(w)
        params[f"w{i + 1}"] = w_pad.astype(jnp.bfloat16)
        b_rows.append(jnp.zeros((max_out_pad,), jnp.float32).at[:fan_out].set(b))
    b_all = jnp.zeros((8, max_out_pad), jnp.float32)
    b_all = b_all.at[:5].set(jnp.stack(b_rows))
    params["b_all"] = b_all
    return params


def reference_forward(x, params, num_states, num_actions):
    """Pure-JAX f32 reference (same stored bf16 weights, f32 activations)."""
    batch = x.shape[0]
    d_in_pad = params["w1"].shape[0]
    h = jnp.zeros((batch, d_in_pad), jnp.float32).at[:, :num_states].set(x)
    for i in range(1, 6):
        w = params[f"w{i}"].astype(jnp.float32)
        b = params["b_all"][i - 1, :w.shape[1]]
        h = h @ w + b
        if i < 5:
            h = jnp.maximum(h, 0.0)
    return h[:, :num_actions]


if __name__ == "__main__":
    batch = 2
    num_states = 16
    num_actions = 8

    key = jax.random.PRNGKey(0)
    key, kx = jax.random.split(key)
    x = jax.random.normal(kx, (batch, num_states), jnp.float32)
    params = init_params(key, num_states, num_actions)

    out = fully_connected_policy_estimator(x, params, num_states, num_actions)
    out = jax.block_until_ready(out)

    ref = reference_forward(x, params, num_states, num_actions)
    assert out.shape == (batch, num_actions)
    # bf16 activations / bf16 output in the kernel vs f32 reference.
    assert jnp.allclose(out, ref, atol=5e-2, rtol=5e-2)

    print("KERNEL_OK")
</pallas_src>

<mosaic_0001>
module attributes {stable_mosaic.version = 11 : i64} {
  func.func @kernel(%arg0: i32, %arg1: memref<16x128xbf16, #tpu.memory_space<vmem>>, %arg2: memref<128x128xbf16, #tpu.memory_space<vmem>>, %arg3: memref<128x256xbf16, #tpu.memory_space<vmem>>, %arg4: memref<256x256xbf16, #tpu.memory_space<vmem>>, %arg5: memref<256x128xbf16, #tpu.memory_space<vmem>>, %arg6: memref<128x128xbf16, #tpu.memory_space<vmem>>, %arg7: memref<8x256xf32, #tpu.memory_space<vmem>>, %arg8: memref<16x128xbf16, #tpu.memory_space<vmem>>) attributes {dimension_semantics = [#tpu.dimension_semantics<parallel>], iteration_bounds = array<i64: 1>, scalar_prefetch = 0 : i64, scratch_operands = 0 : i64, tpu.core_type = #tpu.core_type<tc>, window_params = [{transform_indices = @transform_0, window_bounds = array<i64: 16, 128>}, {pipeline_mode = #tpu.pipeline_mode<synchronous>, transform_indices = @transform_1, window_bounds = array<i64: 128, 128>}, {pipeline_mode = #tpu.pipeline_mode<synchronous>, transform_indices = @transform_2, window_bounds = array<i64: 128, 256>}, {pipeline_mode = #tpu.pipeline_mode<synchronous>, transform_indices = @transform_3, window_bounds = array<i64: 256, 256>}, {pipeline_mode = #tpu.pipeline_mode<synchronous>, transform_indices = @transform_4, window_bounds = array<i64: 256, 128>}, {pipeline_mode = #tpu.pipeline_mode<synchronous>, transform_indices = @transform_5, window_bounds = array<i64: 128, 128>}, {pipeline_mode = #tpu.pipeline_mode<synchronous>, transform_indices = @transform_6, window_bounds = array<i64: 8, 256>}, {transform_indices = @transform_7, window_bounds = array<i64: 16, 128>}]} {
    %c0 = arith.constant 0 : index
    %c0_0 = arith.constant 0 : index
    %0 = vector.load %arg1[%c0, %c0_0] : memref<16x128xbf16, #tpu.memory_space<vmem>>, vector<16x128xbf16>
    %c0_1 = arith.constant 0 : index
    %c0_2 = arith.constant 0 : index
    %1 = vector.load %arg2[%c0_1, %c0_2] : memref<128x128xbf16, #tpu.memory_space<vmem>>, vector<128x128xbf16>
    %cst = arith.constant dense<0.000000e+00> : vector<16x128xf32>
    %2 = tpu.matmul %0, %1, %cst {dimension_numbers = #tpu.dot_dimension_numbers<[1], [0], [0], [1], [0, 0, 1, 1], [], []>} : vector<16x128xbf16>, vector<128x128xbf16>, vector<16x128xf32> -> vector<16x128xf32>
    %c0_3 = arith.constant 0 : index
    %c0_4 = arith.constant 0 : index
    %3 = vector.load %arg7[%c0_3, %c0_4] : memref<8x256xf32, #tpu.memory_space<vmem>>, vector<1x128xf32>
    %4 = vector.broadcast %3 : vector<1x128xf32> to vector<16x128xf32>
    %5 = arith.addf %2, %4 : vector<16x128xf32>
    %cst_5 = arith.constant 0.000000e+00 : f32
    %6 = vector.broadcast %cst_5 : f32 to vector<16x128xf32>
    %7 = arith.maximumf %5, %6 : vector<16x128xf32>
    %8 = arith.truncf %7 : vector<16x128xf32> to vector<16x128xbf16>
    %c0_6 = arith.constant 0 : index
    %c0_7 = arith.constant 0 : index
    %9 = vector.load %arg3[%c0_6, %c0_7] : memref<128x256xbf16, #tpu.memory_space<vmem>>, vector<128x256xbf16>
    %cst_8 = arith.constant dense<0.000000e+00> : vector<16x256xf32>
    %10 = tpu.matmul %8, %9, %cst_8 {dimension_numbers = #tpu.dot_dimension_numbers<[1], [0], [0], [1], [0, 0, 1, 1], [], []>} : vector<16x128xbf16>, vector<128x256xbf16>, vector<16x256xf32> -> vector<16x256xf32>
    %c1 = arith.constant 1 : index
    %c0_9 = arith.constant 0 : index
    %11 = vector.load %arg7[%c1, %c0_9] : memref<8x256xf32, #tpu.memory_space<vmem>>, vector<1x256xf32>
    %12 = vector.broadcast %11 : vector<1x256xf32> to vector<16x256xf32>
    %13 = arith.addf %10, %12 : vector<16x256xf32>
    %cst_10 = arith.constant 0.000000e+00 : f32
    %14 = vector.broadcast %cst_10 : f32 to vector<16x256xf32>
    %15 = arith.maximumf %13, %14 : vector<16x256xf32>
    %16 = arith.truncf %15 : vector<16x256xf32> to vector<16x256xbf16>
    %c0_11 = arith.constant 0 : index
    %c0_12 = arith.constant 0 : index
    %17 = vector.load %arg4[%c0_11, %c0_12] : memref<256x256xbf16, #tpu.memory_space<vmem>>, vector<256x256xbf16>
    %cst_13 = arith.constant dense<0.000000e+00> : vector<16x256xf32>
    %18 = tpu.matmul %16, %17, %cst_13 {dimension_numbers = #tpu.dot_dimension_numbers<[1], [0], [0], [1], [0, 0, 1, 1], [], []>} : vector<16x256xbf16>, vector<256x256xbf16>, vector<16x256xf32> -> vector<16x256xf32>
    %c2 = arith.constant 2 : index
    %c0_14 = arith.constant 0 : index
    %19 = vector.load %arg7[%c2, %c0_14] : memref<8x256xf32, #tpu.memory_space<vmem>>, vector<1x256xf32>
    %20 = vector.broadcast %19 : vector<1x256xf32> to vector<16x256xf32>
    %21 = arith.addf %18, %20 : vector<16x256xf32>
    %cst_15 = arith.constant 0.000000e+00 : f32
    %22 = vector.broadcast %cst_15 : f32 to vector<16x256xf32>
    %23 = arith.maximumf %21, %22 : vector<16x256xf32>
    %24 = arith.truncf %23 : vector<16x256xf32> to vector<16x256xbf16>
    %c0_16 = arith.constant 0 : index
    %c0_17 = arith.constant 0 : index
    %25 = vector.load %arg5[%c0_16, %c0_17] : memref<256x128xbf16, #tpu.memory_space<vmem>>, vector<256x128xbf16>
    %cst_18 = arith.constant dense<0.000000e+00> : vector<16x128xf32>
    %26 = tpu.matmul %24, %25, %cst_18 {dimension_numbers = #tpu.dot_dimension_numbers<[1], [0], [0], [1], [0, 0, 1, 1], [], []>} : vector<16x256xbf16>, vector<256x128xbf16>, vector<16x128xf32> -> vector<16x128xf32>
    %c3 = arith.constant 3 : index
    %c0_19 = arith.constant 0 : index
    %27 = vector.load %arg7[%c3, %c0_19] : memref<8x256xf32, #tpu.memory_space<vmem>>, vector<1x128xf32>
    %28 = vector.broadcast %27 : vector<1x128xf32> to vector<16x128xf32>
    %29 = arith.addf %26, %28 : vector<16x128xf32>
    %cst_20 = arith.constant 0.000000e+00 : f32
    %30 = vector.broadcast %cst_20 : f32 to vector<16x128xf32>
    %31 = arith.maximumf %29, %30 : vector<16x128xf32>
    %32 = arith.truncf %31 : vector<16x128xf32> to vector<16x128xbf16>
    %c0_21 = arith.constant 0 : index
    %c0_22 = arith.constant 0 : index
    %33 = vector.load %arg6[%c0_21, %c0_22] : memref<128x128xbf16, #tpu.memory_space<vmem>>, vector<128x128xbf16>
    %cst_23 = arith.constant dense<0.000000e+00> : vector<16x128xf32>
    %34 = tpu.matmul %32, %33, %cst_23 {dimension_numbers = #tpu.dot_dimension_numbers<[1], [0], [0], [1], [0, 0, 1, 1], [], []>} : vector<16x128xbf16>, vector<128x128xbf16>, vector<16x128xf32> -> vector<16x128xf32>
    %c4 = arith.constant 4 : index
    %c0_24 = arith.constant 0 : index
    %35 = vector.load %arg7[%c4, %c0_24] : memref<8x256xf32, #tpu.memory_space<vmem>>, vector<1x128xf32>
    %36 = vector.broadcast %35 : vector<1x128xf32> to vector<16x128xf32>
    %37 = arith.addf %34, %36 : vector<16x128xf32>
    %38 = arith.truncf %37 : vector<16x128xf32> to vector<16x128xbf16>
    %c0_25 = arith.constant 0 : index
    %c0_26 = arith.constant 0 : index
    %39 = vector.load %arg8[%c0_25, %c0_26] : memref<16x128xbf16, #tpu.memory_space<vmem>>, vector<16x128xbf16>
    tpu.vector_store %arg8[%c0_25, %c0_26], %38 {strides = array<i32>} : memref<16x128xbf16, #tpu.memory_space<vmem>>, vector<16x128xbf16>,
    return
  }
  func.func @transform_0(%arg0: i32) -> (i32, i32) {
    %c0_i32 = arith.constant 0 : i32
    %c0_i32_0 = arith.constant 0 : i32
    return %arg0, %c0_i32 : i32, i32
  }
  func.func @transform_1(%arg0: i32) -> (i32, i32) {
    %c0_i32 = arith.constant 0 : i32
    %c0_i32_0 = arith.constant 0 : i32
    %c0_i32_1 = arith.constant 0 : i32
    return %c0_i32, %c0_i32_0 : i32, i32
  }
  func.func @transform_2(%arg0: i32) -> (i32, i32) {
    %c0_i32 = arith.constant 0 : i32
    %c0_i32_0 = arith.constant 0 : i32
    %c0_i32_1 = arith.constant 0 : i32
    return %c0_i32, %c0_i32_0 : i32, i32
  }
  func.func @transform_3(%arg0: i32) -> (i32, i32) {
    %c0_i32 = arith.constant 0 : i32
    %c0_i32_0 = arith.constant 0 : i32
    %c0_i32_1 = arith.constant 0 : i32
    return %c0_i32, %c0_i32_0 : i32, i32
  }
  func.func @transform_4(%arg0: i32) -> (i32, i32) {
    %c0_i32 = arith.constant 0 : i32
    %c0_i32_0 = arith.constant 0 : i32
    %c0_i32_1 = arith.constant 0 : i32
    return %c0_i32, %c0_i32_0 : i32, i32
  }
  func.func @transform_5(%arg0: i32) -> (i32, i32) {
    %c0_i32 = arith.constant 0 : i32
    %c0_i32_0 = arith.constant 0 : i32
    %c0_i32_1 = arith.constant 0 : i32
    return %c0_i32, %c0_i32_0 : i32, i32
  }
  func.func @transform_6(%arg0: i32) -> (i32, i32) {
    %c0_i32 = arith.constant 0 : i32
    %c0_i32_0 = arith.constant 0 : i32
    %c0_i32_1 = arith.constant 0 : i32
    return %c0_i32, %c0_i32_0 : i32, i32
  }
  func.func @transform_7(%arg0: i32) -> (i32, i32) {
    %c0_i32 = arith.constant 0 : i32
    %c0_i32_0 = arith.constant 0 : i32
    return %arg0, %c0_i32 : i32, i32
  }
}

</mosaic_0001>

<llo_original>
// kernel: tpu_custom_call.1
$region0: #{tpu_custom_call.1}
  #allocation0 [shape = 'u32[]', space=smem, size = 0x4, offset = 0x4, fixed_abs, tag = 'smem constant byte address 0x4 - core index']
  #allocation1 [shape = 'u32[144,128]{1,0:T(1,128)}', space=vmem, size = 0x12000, scoped, tag = 'internal scratch']
  %s0 = inlined_call_operand.hbm [shape: bf16[16,128], index: 0, kind: input, shape index: {}]
  %s1 = inlined_call_operand.hbm [shape: bf16[128,128], index: 1, kind: input, shape index: {}]
  %s2 = inlined_call_operand.hbm [shape: bf16[128,256], index: 2, kind: input, shape index: {}]
  %s3 = inlined_call_operand.hbm [shape: bf16[256,256], index: 3, kind: input, shape index: {}]
  %s4 = inlined_call_operand.hbm [shape: bf16[256,128], index: 4, kind: input, shape index: {}]
  %s5 = inlined_call_operand.hbm [shape: bf16[128,128], index: 5, kind: input, shape index: {}]
  %s6 = inlined_call_operand.vmem [shape: f32[8,256], index: 6, kind: input, shape index: {}]
  %s7 = inlined_call_operand.hbm [shape: bf16[16,128], index: 7, kind: output, shape index: {}]
  %s8 = sld [smem:[#allocation0]]
  $region62: #{tpu_custom_call.1} parent=0
    _
  %s10 = ssub.s32 1, %s8
  %s11 = scalar_select 0, %s10, %s8
  $region1: #{tpu_custom_call.1} parent=0
    #allocation2 [shape = 'u8[4096]{0}', space=vmem, size = 0x1000, scoped, tag = 'input window, operand 0, single buffered']
    #allocation3 [shape = 's32[1]{0}', space=sflag, size = 0x4, scoped, tag = 'scoped memory for tpu_custom_call.1']
    #allocation4 [shape = 's32[1]{0}', space=sflag, size = 0x4, scoped, tag = 'scoped memory for tpu_custom_call.1']
    #allocation5 [shape = 'u8[32768]{0}', space=vmem, size = 0x8000, scoped, tag = 'input window, operand 1, single buffered']
    #allocation6 [shape = 's32[1]{0}', space=sflag, size = 0x4, scoped, tag = 'scoped memory for tpu_custom_call.1']
    #allocation7 [shape = 'u8[65536]{0}', space=vmem, size = 0x10000, scoped, tag = 'input window, operand 2, single buffered']
    #allocation8 [shape = 'u8[131072]{0}', space=vmem, size = 0x20000, scoped, tag = 'input window, operand 3, single buffered']
    #allocation9 [shape = 's32[1]{0}', space=sflag, size = 0x4, scoped, tag = 'scoped memory for tpu_custom_call.1']
    #allocation10 [shape = 'u8[65536]{0}', space=vmem, size = 0x10000, scoped, tag = 'input window, operand 4, single buffered']
    #allocation11 [shape = 'u8[32768]{0}', space=vmem, size = 0x8000, scoped, tag = 'input window, operand 5, single buffered']
    #allocation12 [shape = 's32[1]{0}', space=sflag, size = 0x4, scoped, tag = 'scoped memory for tpu_custom_call.1']
    #allocation13 [shape = 'u8[4096]{0}', space=vmem, size = 0x1000, scoped, tag = 'output window, operand 0, single buffered']
    %12 = vsyncpa [#allocation3], 0
    %13 = vsyncpa [#allocation6], 0
    %14 = vsyncpa [#allocation9], 0
    %15 = vsyncpa [#allocation12], 0
    %16 = vsyncpa [#allocation4], 0
    // Predicated region
    $region2: #{tpu_custom_call.1} parent=1 // pred_check
      _
    $region3: #{tpu_custom_call.1} parent=1 // pred_check_branch
      %18 = sbr.rel (0) target = $region5
    $region4: #{tpu_custom_call.1} parent=1 // pred_region
      %s20 = ssub.s32 128, 128
      %21 = vsyncadd [#allocation3], %s20
      %s22 = sshll.u32 [#allocation2], 4
      %s23 = int_to_ptr.vmem [resolvable:$true] %s22
      %28 = dma.hbm_to_vmem [thread:$0]  %s0, 128, %s23, [#allocation3], 64, 64, 4
    $region5: #{tpu_custom_call.1} parent=1 // pred_fallthru
      _
    // Predicated region
    $region6: #{tpu_custom_call.1} parent=1 // pred_check
      _
    $region7: #{tpu_custom_call.1} parent=1 // pred_check_branch
      %30 = sbr.rel (0) target = $region9
    $region8: #{tpu_custom_call.1} parent=1 // pred_region
      %s32 = ssub.s32 1024, 1024
      %33 = vsyncadd [#allocation6], %s32
      %s34 = sshll.u32 [#allocation5], 4
      %s35 = int_to_ptr.vmem [resolvable:$true] %s34
      %40 = dma.hbm_to_vmem [thread:$0]  %s1, 1024, %s35, [#allocation6], 64, 64, 4
    $region9: #{tpu_custom_call.1} parent=1 // pred_fallthru
      _
    // Predicated region
    $region10: #{tpu_custom_call.1} parent=1 // pred_check
      _
    $region11: #{tpu_custom_call.1} parent=1 // pred_check_branch
      %42 = sbr.rel (0) target = $region13
    $region12: #{tpu_custom_call.1} parent=1 // pred_region
      %s44 = ssub.s32 2048, 2048
      %45 = vsyncadd [#allocation6], %s44
      %s46 = sshll.u32 [#allocation7], 4
      %s47 = int_to_ptr.vmem [resolvable:$true] %s46
      %52 = dma.hbm_to_vmem [thread:$0]  %s2, 2048, %s47, [#allocation6], 128, 128, 8
    $region13: #{tpu_custom_call.1} parent=1 // pred_fallthru
      _
    // Predicated region
    $region14: #{tpu_custom_call.1} parent=1 // pred_check
      _
    $region15: #{tpu_custom_call.1} parent=1 // pred_check_branch
      %54 = sbr.rel (0) target = $region17
    $region16: #{tpu_custom_call.1} parent=1 // pred_region
      %s56 = ssub.s32 4096, 4096
      %57 = vsyncadd [#allocation9], %s56
      %s58 = sshll.u32 [#allocation8], 4
      %s59 = int_to_ptr.vmem [resolvable:$true] %s58
      %64 = dma.hbm_to_vmem [thread:$0]  %s3, 4096, %s59, [#allocation9], 128, 128, 8
    $region17: #{tpu_custom_call.1} parent=1 // pred_fallthru
      _
    // Predicated region
    $region18: #{tpu_custom_call.1} parent=1 // pred_check
      _
    $region19: #{tpu_custom_call.1} parent=1 // pred_check_branch
      %66 = sbr.rel (0) target = $region21
    $region20: #{tpu_custom_call.1} parent=1 // pred_region
      %s68 = ssub.s32 2048, 2048
      %69 = vsyncadd [#allocation9], %s68
      %s70 = sshll.u32 [#allocation10], 4
      %s71 = int_to_ptr.vmem [resolvable:$true] %s70
      %76 = dma.hbm_to_vmem [thread:$0]  %s4, 2048, %s71, [#allocation9], 64, 64, 4
    $region21: #{tpu_custom_call.1} parent=1 // pred_fallthru
      _
    // Predicated region
    $region22: #{tpu_custom_call.1} parent=1 // pred_check
      _
    $region23: #{tpu_custom_call.1} parent=1 // pred_check_branch
      %78 = sbr.rel (0) target = $region25
    $region24: #{tpu_custom_call.1} parent=1 // pred_region
      %s80 = ssub.s32 1024, 1024
      %81 = vsyncadd [#allocation12], %s80
      %s82 = sshll.u32 [#allocation11], 4
      %s83 = int_to_ptr.vmem [resolvable:$true] %s82
      %88 = dma.hbm_to_vmem [thread:$0]  %s5, 1024, %s83, [#allocation12], 64, 64, 4
    $region25: #{tpu_custom_call.1} parent=1 // pred_fallthru
      _
    // Predicated region
    $region26: #{tpu_custom_call.1} parent=1 // pred_check
      _
    $region27: #{tpu_custom_call.1} parent=1 // pred_check_branch
      %90 = sbr.rel (0) target = $region29
    $region28: #{tpu_custom_call.1} parent=1 // pred_region
      _
    $region29: #{tpu_custom_call.1} parent=1 // pred_fallthru
      _
    // Predicated region
    $region30: #{tpu_custom_call.1} parent=1 // pred_check
      _
    $region31: #{tpu_custom_call.1} parent=1 // pred_check_branch
      %92 = sbr.rel (0) target = $region33
    $region32: #{tpu_custom_call.1} parent=1 // pred_region
      %93 = dma.done [#allocation3], 128
    $region33: #{tpu_custom_call.1} parent=1 // pred_fallthru
      _
    // Predicated region
    $region34: #{tpu_custom_call.1} parent=1 // pred_check
      _
    $region35: #{tpu_custom_call.1} parent=1 // pred_check_branch
      %95 = sbr.rel (0) target = $region37
    $region36: #{tpu_custom_call.1} parent=1 // pred_region
      %96 = dma.done [#allocation6], 1024
    $region37: #{tpu_custom_call.1} parent=1 // pred_fallthru
      _
    // Predicated region
    $region38: #{tpu_custom_call.1} parent=1 // pred_check
      _
    $region39: #{tpu_custom_call.1} parent=1 // pred_check_branch
      %98 = sbr.rel (0) target = $region41
    $region40: #{tpu_custom_call.1} parent=1 // pred_region
      %99 = dma.done [#allocation6], 2048
    $region41: #{tpu_custom_call.1} parent=1 // pred_fallthru
      _
    // Predicated region
    $region42: #{tpu_custom_call.1} parent=1 // pred_check
      _
    $region43: #{tpu_custom_call.1} parent=1 // pred_check_branch
      %101 = sbr.rel (0) target = $region45
    $region44: #{tpu_custom_call.1} parent=1 // pred_region
      %102 = dma.done [#allocation9], 4096
    $region45: #{tpu_custom_call.1} parent=1 // pred_fallthru
      _
    // Predicated region
    $region46: #{tpu_custom_call.1} parent=1 // pred_check
      _
    $region47: #{tpu_custom_call.1} parent=1 // pred_check_branch
      %104 = sbr.rel (0) target = $region49
    $region48: #{tpu_custom_call.1} parent=1 // pred_region
      %105 = dma.done [#allocation9], 2048
    $region49: #{tpu_custom_call.1} parent=1 // pred_fallthru
      _
    // Predicated region
    $region50: #{tpu_custom_call.1} parent=1 // pred_check
      _
    $region51: #{tpu_custom_call.1} parent=1 // pred_check_branch
      %107 = sbr.rel (0) target = $region53
    $region52: #{tpu_custom_call.1} parent=1 // pred_region
      %108 = dma.done [#allocation12], 1024
    $region53: #{tpu_custom_call.1} parent=1 // pred_fallthru
      _
    %v110 = vld [vmem:[#allocation2] sm:$0xf]
    %v111 = vld [vmem:[#allocation2 + $0x4] sm:$0xf]
    %v112 = vld [vmem:[#allocation5] sm:$0xf]
    %v113 = vld [vmem:[#allocation5 + $0x4] sm:$0xf]
    %v114 = vld [vmem:[#allocation5 + $0x8] sm:$0xf]
    %v115 = vld [vmem:[#allocation5 + $0xc] sm:$0xf]
    %v116 = vld [vmem:[#allocation5 + $0x10] sm:$0xf]
    %v117 = vld [vmem:[#allocation5 + $0x14] sm:$0xf]
    %v118 = vld [vmem:[#allocation5 + $0x18] sm:$0xf]
    %v119 = vld [vmem:[#allocation5 + $0x1c] sm:$0xf]
    %v120 = vld [vmem:[#allocation5 + $0x20] sm:$0xf]
    %v121 = vld [vmem:[#allocation5 + $0x24] sm:$0xf]
    %v122 = vld [vmem:[#allocation5 + $0x28] sm:$0xf]
    %v123 = vld [vmem:[#allocation5 + $0x2c] sm:$0xf]
    %v124 = vld [vmem:[#allocation5 + $0x30] sm:$0xf]
    %v125 = vld [vmem:[#allocation5 + $0x34] sm:$0xf]
    %v126 = vld [vmem:[#allocation5 + $0x38] sm:$0xf]
    %v127 = vld [vmem:[#allocation5 + $0x3c] sm:$0xf]
    %v128 = vld [vmem:[%s6] ss:$0 sm:$0xff]
    %v131 = vunpack.c.l.b16 %v110
    %v132 = vunpack.c.l.b16 %v111
    %v133 = vpack.c.b16 %v132, %v131
    %v151 = vunpack.c.l.b16 %v112
    %v152 = vunpack.c.l.b16 %v113
    %v153 = vunpack.c.l.b16 %v114
    %v154 = vunpack.c.l.b16 %v115
    %v155 = vunpack.c.l.b16 %v116
    %v156 = vunpack.c.l.b16 %v117
    %v157 = vunpack.c.l.b16 %v118
    %v158 = vunpack.c.l.b16 %v119
    %v159 = vunpack.c.l.b16 %v120
    %v160 = vunpack.c.l.b16 %v121
    %v161 = vunpack.c.l.b16 %v122
    %v162 = vunpack.c.l.b16 %v123
    %v163 = vunpack.c.l.b16 %v124
    %v164 = vunpack.c.l.b16 %v125
    %v165 = vunpack.c.l.b16 %v126
    %v166 = vunpack.c.l.b16 %v127
    %v167 = vpack.c.b16 %v152, %v151
    %v168 = vpack.c.b16 %v154, %v153
    %v169 = vpack.c.b16 %v156, %v155
    %v170 = vpack.c.b16 %v158, %v157
    %v171 = vpack.c.b16 %v160, %v159
    %v172 = vpack.c.b16 %v162, %v161
    %v173 = vpack.c.b16 %v164, %v163
    %v174 = vpack.c.b16 %v166, %v165
    %183 = vmatprep.subr.bf16.mxu0 0
    %184 = vmatpush1.bf16.msra.mxu0 %v167
    %185 = vmatprep.subr.bf16.mxu0 0
    %186 = vmatpush1.bf16.msra.mxu0 %v168
    %187 = vmatprep.subr.bf16.mxu0 0
    %188 = vmatpush1.bf16.msra.mxu0 %v169
    %189 = vmatprep.subr.bf16.mxu0 0
    %190 = vmatpush1.bf16.msra.mxu0 %v170
    %191 = vmatprep.subr.bf16.mxu0 0
    %192 = vmatpush1.bf16.msra.mxu0 %v171
    %193 = vmatprep.subr.bf16.mxu0 0
    %194 = vmatpush1.bf16.msra.mxu0 %v172
    %195 = vmatprep.subr.bf16.mxu0 0
    %196 = vmatpush1.bf16.msra.mxu0 %v173
    %197 = vmatprep.subr.bf16.mxu0 0
    %198 = vmatpush1.bf16.msra.mxu0 %v174
    %199 = vmatprep.subr.bf16.mxu0 0
    %200 = vmatpush1.bf16.msra.mxu0 0
    %201 = vmatprep.subr.bf16.mxu0 0
    %202 = vmatpush1.bf16.msra.mxu0 0
    %203 = vmatprep.subr.bf16.mxu0 0
    %204 = vmatpush1.bf16.msra.mxu0 0
    %205 = vmatprep.subr.bf16.mxu0 0
    %206 = vmatpush1.bf16.msra.mxu0 0
    %207 = vmatprep.subr.bf16.mxu0 0
    %208 = vmatpush1.bf16.msra.mxu0 0
    %209 = vmatprep.subr.bf16.mxu0 0
    %210 = vmatpush1.bf16.msra.mxu0 0
    %211 = vmatprep.subr.bf16.mxu0 0
    %212 = vmatpush1.bf16.msra.mxu0 0
    %213 = vmatprep.subr.bf16.mxu0 0
    %214 = vmatpush1.bf16.msra.mxu0 0
    %215 = vmatprep.mubr.bf16.mxu0 0
    %216 = vmatmul.mubr.bf16.gmra.mrb[0].mxu0 %v133
    %v217 = vpop.f32.mrb[0].mxu0
    %v218 = vadd.f32 %v128, %v217
    %v219 = vpop.f32.mrb[0].mxu0
    %v220 = vpop.f32.mrb[0].mxu0
    %v221 = vadd.f32 %v128, %v220
    %v222 = vpop.f32.mrb[0].mxu0
    %223 = vdwg.mxu0
    %v224 = vmax.f32 %v218, 0.0
    %v225 = vmax.f32 %v221, 0.0
    %v226 = vpack.c.bf16 %v225, %v224
    %v227 = vld [vmem:[#allocation7] sm:$0xff]
    %v228 = vld [vmem:[#allocation7 + $0x8] sm:$0xff]
    %v229 = vld [vmem:[#allocation7 + $0x10] sm:$0xff]
    %v230 = vld [vmem:[#allocation7 + $0x18] sm:$0xff]
    %v231 = vld [vmem:[#allocation7 + $0x20] sm:$0xff]
    %v232 = vld [vmem:[#allocation7 + $0x28] sm:$0xff]
    %v233 = vld [vmem:[#allocation7 + $0x30] sm:$0xff]
    %v234 = vld [vmem:[#allocation7 + $0x38] sm:$0xff]
    %v235 = vld [vmem:[#allocation7 + $0x40] sm:$0xff]
    %v236 = vld [vmem:[#allocation7 + $0x48] sm:$0xff]
    %v237 = vld [vmem:[#allocation7 + $0x50] sm:$0xff]
    %v238 = vld [vmem:[#allocation7 + $0x58] sm:$0xff]
    %v239 = vld [vmem:[#allocation7 + $0x60] sm:$0xff]
    %v240 = vld [vmem:[#allocation7 + $0x68] sm:$0xff]
    %v241 = vld [vmem:[#allocation7 + $0x70] sm:$0xff]
    %v242 = vld [vmem:[#allocation7 + $0x78] sm:$0xff]
    %s243 = scalar_lea.vmem %s6, 1
    %v244 = vld [vmem:[%s243] ss:$8 sm:$0x3]
    %v246 = vlaneseq
    %v247 = vshrl.u32 %v246, 7
    %v248 = vsub.s32 0, %v247
    %v249 = vrot.slane %v244, %v248
    %v250 = vlaneseq
    %v251 = vshrl.u32 %v250, 7
    %v252 = vsub.s32 1, %v251
    %v253 = vrot.slane %v244, %v252
    %v272 = vunpack.c.l.b16 %v227
    %v273 = vunpack.c.h.b16 %v227
    %v274 = vunpack.c.l.b16 %v228
    %v275 = vunpack.c.h.b16 %v228
    %v276 = vunpack.c.l.b16 %v229
    %v277 = vunpack.c.h.b16 %v229
    %v278 = vunpack.c.l.b16 %v230
    %v279 = vunpack.c.h.b16 %v230
    %v280 = vunpack.c.l.b16 %v231
    %v281 = vunpack.c.h.b16 %v231
    %v282 = vunpack.c.l.b16 %v232
    %v283 = vunpack.c.h.b16 %v232
    %v284 = vunpack.c.l.b16 %v233
    %v285 = vunpack.c.h.b16 %v233
    %v286 = vunpack.c.l.b16 %v234
    %v287 = vunpack.c.h.b16 %v234
    %v288 = vunpack.c.l.b16 %v235
    %v289 = vunpack.c.h.b16 %v235
    %v290 = vunpack.c.l.b16 %v236
    %v291 = vunpack.c.h.b16 %v236
    %v292 = vunpack.c.l.b16 %v237
    %v293 = vunpack.c.h.b16 %v237
    %v294 = vunpack.c.l.b16 %v238
    %v295 = vunpack.c.h.b16 %v238
    %v296 = vunpack.c.l.b16 %v239
    %v297 = vunpack.c.h.b16 %v239
    %v298 = vunpack.c.l.b16 %v240
    %v299 = vunpack.c.h.b16 %v240
    %v300 = vunpack.c.l.b16 %v241
    %v301 = vunpack.c.h.b16 %v241
    %v302 = vunpack.c.l.b16 %v242
    %v303 = vunpack.c.h.b16 %v242
    %v304 = vpack.c.b16 %v274, %v272
    %v305 = vpack.c.b16 %v275, %v273
    %v306 = vpack.c.b16 %v278, %v276
    %v307 = vpack.c.b16 %v279, %v277
    %v308 = vpack.c.b16 %v282, %v280
    %v309 = vpack.c.b16 %v283, %v281
    %v310 = vpack.c.b16 %v286, %v284
    %v311 = vpack.c.b16 %v287, %v285
    %v312 = vpack.c.b16 %v290, %v288
    %v313 = vpack.c.b16 %v291, %v289
    %v314 = vpack.c.b16 %v294, %v292
    %v315 = vpack.c.b16 %v295, %v293
    %v316 = vpack.c.b16 %v298, %v296
    %v317 = vpack.c.b16 %v299, %v297
    %v318 = vpack.c.b16 %v302, %v300
    %v319 = vpack.c.b16 %v303, %v301
    %336 = vmatprep.subr.bf16.mxu0 %v305
    %337 = vmatpush1.bf16.msra.mxu0 %v304
    %338 = vmatprep.subr.bf16.mxu0 %v307
    %339 = vmatpush1.bf16.msra.mxu0 %v306
    %340 = vmatprep.subr.bf16.mxu0 %v309
    %341 = vmatpush1.bf16.msra.mxu0 %v308
    %342 = vmatprep.subr.bf16.mxu0 %v311
    %343 = vmatpush1.bf16.msra.mxu0 %v310
    %344 = vmatprep.subr.bf16.mxu0 %v313
    %345 = vmatpush1.bf16.msra.mxu0 %v312
    %346 = vmatprep.subr.bf16.mxu0 %v315
    %347 = vmatpush1.bf16.msra.mxu0 %v314
    %348 = vmatprep.subr.bf16.mxu0 %v317
    %349 = vmatpush1.bf16.msra.mxu0 %v316
    %350 = vmatprep.subr.bf16.mxu0 %v319
    %351 = vmatpush1.bf16.msra.mxu0 %v318
    %352 = vmatprep.subr.bf16.mxu0 0
    %353 = vmatpush1.bf16.msra.mxu0 0
    %354 = vmatprep.subr.bf16.mxu0 0
    %355 = vmatpush1.bf16.msra.mxu0 0
    %356 = vmatprep.subr.bf16.mxu0 0
    %357 = vmatpush1.bf16.msra.mxu0 0
    %358 = vmatprep.subr.bf16.mxu0 0
    %359 = vmatpush1.bf16.msra.mxu0 0
    %360 = vmatprep.subr.bf16.mxu0 0
    %361 = vmatpush1.bf16.msra.mxu0 0
    %362 = vmatprep.subr.bf16.mxu0 0
    %363 = vmatpush1.bf16.msra.mxu0 0
    %364 = vmatprep.subr.bf16.mxu0 0
    %365 = vmatpush1.bf16.msra.mxu0 0
    %366 = vmatprep.subr.bf16.mxu0 0
    %367 = vmatpush1.bf16.msra.mxu0 0
    %368 = vmatprep.mubr.bf16.mxu0 0
    %369 = vmatmul.mubr.bf16.gmra.mrb[0].mxu0 %v226
    %v370 = vpop.f32.mrb[0].mxu0
    %v371 = vadd.f32 %v249, %v370
    %v372 = vpop.f32.mrb[0].mxu0
    %v373 = vadd.f32 %v253, %v372
    %v374 = vpop.f32.mrb[0].mxu0
    %v375 = vadd.f32 %v249, %v374
    %v376 = vpop.f32.mrb[0].mxu0
    %v377 = vadd.f32 %v253, %v376
    %378 = vdwg.mxu0
    %v379 = vmax.f32 %v371, 0.0
    %v380 = vmax.f32 %v373, 0.0
    %v381 = vmax.f32 %v375, 0.0
    %v382 = vmax.f32 %v377, 0.0
    %v383 = vpack.c.bf16 %v381, %v379
    %v384 = vpack.c.bf16 %v382, %v380
    %v385 = vld [vmem:[#allocation8] sm:$0xff]
    %v386 = vld [vmem:[#allocation8 + $0x8] sm:$0xff]
    %v387 = vld [vmem:[#allocation8 + $0x10] sm:$0xff]
    %v388 = vld [vmem:[#allocation8 + $0x18] sm:$0xff]
    %v389 = vld [vmem:[#allocation8 + $0x20] sm:$0xff]
    %v390 = vld [vmem:[#allocation8 + $0x28] sm:$0xff]
    %v391 = vld [vmem:[#allocation8 + $0x30] sm:$0xff]
    %v392 = vld [vmem:[#allocation8 + $0x38] sm:$0xff]
    %v393 = vld [vmem:[#allocation8 + $0x40] sm:$0xff]
    %v394 = vld [vmem:[#allocation8 + $0x48] sm:$0xff]
    %v395 = vld [vmem:[#allocation8 + $0x50] sm:$0xff]
    %v396 = vld [vmem:[#allocation8 + $0x58] sm:$0xff]
    %v397 = vld [vmem:[#allocation8 + $0x60] sm:$0xff]
    %v398 = vld [vmem:[#allocation8 + $0x68] sm:$0xff]
    %v399 = vld [vmem:[#allocation8 + $0x70] sm:$0xff]
    %v400 = vld [vmem:[#allocation8 + $0x78] sm:$0xff]
    %v401 = vld [vmem:[#allocation8 + $0x80] sm:$0xff]
    %v402 = vld [vmem:[#allocation8 + $0x88] sm:$0xff]
    %v403 = vld [vmem:[#allocation8 + $0x90] sm:$0xff]
    %v404 = vld [vmem:[#allocation8 + $0x98] sm:$0xff]
    %v405 = vld [vmem:[#allocation8 + $0xa0] sm:$0xff]
    %v406 = vld [vmem:[#allocation8 + $0xa8] sm:$0xff]
    %v407 = vld [vmem:[#allocation8 + $0xb0] sm:$0xff]
    %v408 = vld [vmem:[#allocation8 + $0xb8] sm:$0xff]
    %v409 = vld [vmem:[#allocation8 + $0xc0] sm:$0xff]
    %v410 = vld [vmem:[#allocation8 + $0xc8] sm:$0xff]
    %v411 = vld [vmem:[#allocation8 + $0xd0] sm:$0xff]
    %v412 = vld [vmem:[#allocation8 + $0xd8] sm:$0xff]
    %v413 = vld [vmem:[#allocation8 + $0xe0] sm:$0xff]
    %v414 = vld [vmem:[#allocation8 + $0xe8] sm:$0xff]
    %v415 = vld [vmem:[#allocation8 + $0xf0] sm:$0xff]
    %v416 = vld [vmem:[#allocation8 + $0xf8] sm:$0xff]
    %s417 = scalar_lea.vmem %s6, 2
    %v418 = vld [vmem:[%s417] ss:$8 sm:$0x3]
    %v420 = vlaneseq
    %v421 = vshrl.u32 %v420, 7
    %v422 = vsub.s32 0, %v421
    %v423 = vrot.slane %v418, %v422
    %v424 = vlaneseq
    %v425 = vshrl.u32 %v424, 7
    %v426 = vsub.s32 1, %v425
    %v427 = vrot.slane %v418, %v426
    %v462 = vunpack.c.l.b16 %v385
    %v463 = vunpack.c.h.b16 %v385
    %v464 = vunpack.c.l.b16 %v386
    %v465 = vunpack.c.h.b16 %v386
    %v466 = vunpack.c.l.b16 %v387
    %v467 = vunpack.c.h.b16 %v387
    %v468 = vunpack.c.l.b16 %v388
    %v469 = vunpack.c.h.b16 %v388
    %v470 = vunpack.c.l.b16 %v389
    %v471 = vunpack.c.h.b16 %v389
    %v472 = vunpack.c.l.b16 %v390
    %v473 = vunpack.c.h.b16 %v390
    %v474 = vunpack.c.l.b16 %v391
    %v475 = vunpack.c.h.b16 %v391
    %v476 = vunpack.c.l.b16 %v392
    %v477 = vunpack.c.h.b16 %v392
    %v478 = vunpack.c.l.b16 %v393
    %v479 = vunpack.c.h.b16 %v393
    %v480 = vunpack.c.l.b16 %v394
    %v481 = vunpack.c.h.b16 %v394
    %v482 = vunpack.c.l.b16 %v395
    %v483 = vunpack.c.h.b16 %v395
    %v484 = vunpack.c.l.b16 %v396
    %v485 = vunpack.c.h.b16 %v396
    %v486 = vunpack.c.l.b16 %v397
    %v487 = vunpack.c.h.b16 %v397
    %v488 = vunpack.c.l.b16 %v398
    %v489 = vunpack.c.h.b16 %v398
    %v490 = vunpack.c.l.b16 %v399
    %v491 = vunpack.c.h.b16 %v399
    %v492 = vunpack.c.l.b16 %v400
    %v493 = vunpack.c.h.b16 %v400
    %v494 = vunpack.c.l.b16 %v401
    %v495 = vunpack.c.h.b16 %v401
    %v496 = vunpack.c.l.b16 %v402
    %v497 = vunpack.c.h.b16 %v402
    %v498 = vunpack.c.l.b16 %v403
    %v499 = vunpack.c.h.b16 %v403
    %v500 = vunpack.c.l.b16 %v404
    %v501 = vunpack.c.h.b16 %v404
    %v502 = vunpack.c.l.b16 %v405
    %v503 = vunpack.c.h.b16 %v405
    %v504 = vunpack.c.l.b16 %v406
    %v505 = vunpack.c.h.b16 %v406
    %v506 = vunpack.c.l.b16 %v407
    %v507 = vunpack.c.h.b16 %v407
    %v508 = vunpack.c.l.b16 %v408
    %v509 = vunpack.c.h.b16 %v408
    %v510 = vunpack.c.l.b16 %v409
    %v511 = vunpack.c.h.b16 %v409
    %v512 = vunpack.c.l.b16 %v410
    %v513 = vunpack.c.h.b16 %v410
    %v514 = vunpack.c.l.b16 %v411
    %v515 = vunpack.c.h.b16 %v411
    %v516 = vunpack.c.l.b16 %v412
    %v517 = vunpack.c.h.b16 %v412
    %v518 = vunpack.c.l.b16 %v413
    %v519 = vunpack.c.h.b16 %v413
    %v520 = vunpack.c.l.b16 %v414
    %v521 = vunpack.c.h.b16 %v414
    %v522 = vunpack.c.l.b16 %v415
    %v523 = vunpack.c.h.b16 %v415
    %v524 = vunpack.c.l.b16 %v416
    %v525 = vunpack.c.h.b16 %v416
    %v526 = vpack.c.b16 %v464, %v462
    %v527 = vpack.c.b16 %v465, %v463
    %v528 = vpack.c.b16 %v468, %v466
    %v529 = vpack.c.b16 %v469, %v467
    %v530 = vpack.c.b16 %v472, %v470
    %v531 = vpack.c.b16 %v473, %v471
    %v532 = vpack.c.b16 %v476, %v474
    %v533 = vpack.c.b16 %v477, %v475
    %v534 = vpack.c.b16 %v480, %v478
    %v535 = vpack.c.b16 %v481, %v479
    %v536 = vpack.c.b16 %v484, %v482
    %v537 = vpack.c.b16 %v485, %v483
    %v538 = vpack.c.b16 %v488, %v486
    %v539 = vpack.c.b16 %v489, %v487
    %v540 = vpack.c.b16 %v492, %v490
    %v541 = vpack.c.b16 %v493, %v491
    %v542 = vpack.c.b16 %v496, %v494
    %v543 = vpack.c.b16 %v497, %v495
    %v544 = vpack.c.b16 %v500, %v498
    %v545 = vpack.c.b16 %v501, %v499
    %v546 = vpack.c.b16 %v504, %v502
    %v547 = vpack.c.b16 %v505, %v503
    %v548 = vpack.c.b16 %v508, %v506
    %v549 = vpack.c.b16 %v509, %v507
    %v550 = vpack.c.b16 %v512, %v510
    %v551 = vpack.c.b16 %v513, %v511
    %v552 = vpack.c.b16 %v516, %v514
    %v553 = vpack.c.b16 %v517, %v515
    %v554 = vpack.c.b16 %v520, %v518
    %v555 = vpack.c.b16 %v521, %v519
    %v556 = vpack.c.b16 %v524, %v522
    %v557 = vpack.c.b16 %v525, %v523
    %590 = vmatprep.subr.bf16.mxu0 %v527
    %591 = vmatpush1.bf16.msra.mxu0 %v526
    %592 = vmatprep.subr.bf16.mxu0 %v529
    %593 = vmatpush1.bf16.msra.mxu0 %v528
    %594 = vmatprep.subr.bf16.mxu0 %v531
    %595 = vmatpush1.bf16.msra.mxu0 %v530
    %596 = vmatprep.subr.bf16.mxu0 %v533
    %597 = vmatpush1.bf16.msra.mxu0 %v532
    %598 = vmatprep.subr.bf16.mxu0 %v535
    %599 = vmatpush1.bf16.msra.mxu0 %v534
    %600 = vmatprep.subr.bf16.mxu0 %v537
    %601 = vmatpush1.bf16.msra.mxu0 %v536
    %602 = vmatprep.subr.bf16.mxu0 %v539
    %603 = vmatpush1.bf16.msra.mxu0 %v538
    %604 = vmatprep.subr.bf16.mxu0 %v541
    %605 = vmatpush1.bf16.msra.mxu0 %v540
    %606 = vmatprep.subr.bf16.mxu0 %v543
    %607 = vmatpush1.bf16.msra.mxu0 %v542
    %608 = vmatprep.subr.bf16.mxu0 %v545
    %609 = vmatpush1.bf16.msra.mxu0 %v544
    %610 = vmatprep.subr.bf16.mxu0 %v547
    %611 = vmatpush1.bf16.msra.mxu0 %v546
    %612 = vmatprep.subr.bf16.mxu0 %v549
    %613 = vmatpush1.bf16.msra.mxu0 %v548
    %614 = vmatprep.subr.bf16.mxu0 %v551
    %615 = vmatpush1.bf16.msra.mxu0 %v550
    %616 = vmatprep.subr.bf16.mxu0 %v553
    %617 = vmatpush1.bf16.msra.mxu0 %v552
    %618 = vmatprep.subr.bf16.mxu0 %v555
    %619 = vmatpush1.bf16.msra.mxu0 %v554
    %620 = vmatprep.subr.bf16.mxu0 %v557
    %621 = vmatpush1.bf16.msra.mxu0 %v556
    %622 = vmatprep.mubr.bf16.mxu0 %v384
    %623 = vmatmul.mubr.bf16.gmra.mrb[0].mxu0 %v383
    %v624 = vpop.f32.mrb[0].mxu0
    %v625 = vadd.f32 %v423, %v624
    %v626 = vpop.f32.mrb[0].mxu0
    %v627 = vadd.f32 %v427, %v626
    %v628 = vpop.f32.mrb[0].mxu0
    %v629 = vadd.f32 %v423, %v628
    %v630 = vpop.f32.mrb[0].mxu0
    %v631 = vadd.f32 %v427, %v630
    %632 = vdwg.mxu0
    %v633 = vmax.f32 %v625, 0.0
    %v634 = vmax.f32 %v627, 0.0
    %v635 = vmax.f32 %v629, 0.0
    %v636 = vmax.f32 %v631, 0.0
    %v637 = vpack.c.bf16 %v635, %v633
    %v638 = vpack.c.bf16 %v636, %v634
    %v639 = vld [vmem:[#allocation10] sm:$0xf]
    %v640 = vld [vmem:[#allocation10 + $0x4] sm:$0xf]
    %v641 = vld [vmem:[#allocation10 + $0x8] sm:$0xf]
    %v642 = vld [vmem:[#allocation10 + $0xc] sm:$0xf]
    %v643 = vld [vmem:[#allocation10 + $0x10] sm:$0xf]
    %v644 = vld [vmem:[#allocation10 + $0x14] sm:$0xf]
    %v645 = vld [vmem:[#allocation10 + $0x18] sm:$0xf]
    %v646 = vld [vmem:[#allocation10 + $0x1c] sm:$0xf]
    %v647 = vld [vmem:[#allocation10 + $0x20] sm:$0xf]
    %v648 = vld [vmem:[#allocation10 + $0x24] sm:$0xf]
    %v649 = vld [vmem:[#allocation10 + $0x28] sm:$0xf]
    %v650 = vld [vmem:[#allocation10 + $0x2c] sm:$0xf]
    %v651 = vld [vmem:[#allocation10 + $0x30] sm:$0xf]
    %v652 = vld [vmem:[#allocation10 + $0x34] sm:$0xf]
    %v653 = vld [vmem:[#allocation10 + $0x38] sm:$0xf]
    %v654 = vld [vmem:[#allocation10 + $0x3c] sm:$0xf]
    %v655 = vld [vmem:[#allocation10 + $0x40] sm:$0xf]
    %v656 = vld [vmem:[#allocation10 + $0x44] sm:$0xf]
    %v657 = vld [vmem:[#allocation10 + $0x48] sm:$0xf]
    %v658 = vld [vmem:[#allocation10 + $0x4c] sm:$0xf]
    %v659 = vld [vmem:[#allocation10 + $0x50] sm:$0xf]
    %v660 = vld [vmem:[#allocation10 + $0x54] sm:$0xf]
    %v661 = vld [vmem:[#allocation10 + $0x58] sm:$0xf]
    %v662 = vld [vmem:[#allocation10 + $0x5c] sm:$0xf]
    %v663 = vld [vmem:[#allocation10 + $0x60] sm:$0xf]
    %v664 = vld [vmem:[#allocation10 + $0x64] sm:$0xf]
    %v665 = vld [vmem:[#allocation10 + $0x68] sm:$0xf]
    %v666 = vld [vmem:[#allocation10 + $0x6c] sm:$0xf]
    %v667 = vld [vmem:[#allocation10 + $0x70] sm:$0xf]
    %v668 = vld [vmem:[#allocation10 + $0x74] sm:$0xf]
    %v669 = vld [vmem:[#allocation10 + $0x78] sm:$0xf]
    %v670 = vld [vmem:[#allocation10 + $0x7c] sm:$0xf]
    %v671 = vld [vmem:[%s6 + $0x3] ss:$0 sm:$0xff]
    %v704 = vunpack.c.l.b16 %v639
    %v705 = vunpack.c.l.b16 %v640
    %v706 = vunpack.c.l.b16 %v641
    %v707 = vunpack.c.l.b16 %v642
    %v708 = vunpack.c.l.b16 %v643
    %v709 = vunpack.c.l.b16 %v644
    %v710 = vunpack.c.l.b16 %v645
    %v711 = vunpack.c.l.b16 %v646
    %v712 = vunpack.c.l.b16 %v647
    %v713 = vunpack.c.l.b16 %v648
    %v714 = vunpack.c.l.b16 %v649
    %v715 = vunpack.c.l.b16 %v650
    %v716 = vunpack.c.l.b16 %v651
    %v717 = vunpack.c.l.b16 %v652
    %v718 = vunpack.c.l.b16 %v653
    %v719 = vunpack.c.l.b16 %v654
    %v720 = vunpack.c.l.b16 %v655
    %v721 = vunpack.c.l.b16 %v656
    %v722 = vunpack.c.l.b16 %v657
    %v723 = vunpack.c.l.b16 %v658
    %v724 = vunpack.c.l.b16 %v659
    %v725 = vunpack.c.l.b16 %v660
    %v726 = vunpack.c.l.b16 %v661
    %v727 = vunpack.c.l.b16 %v662
    %v728 = vunpack.c.l.b16 %v663
    %v729 = vunpack.c.l.b16 %v664
    %v730 = vunpack.c.l.b16 %v665
    %v731 = vunpack.c.l.b16 %v666
    %v732 = vunpack.c.l.b16 %v667
    %v733 = vunpack.c.l.b16 %v668
    %v734 = vunpack.c.l.b16 %v669
    %v735 = vunpack.c.l.b16 %v670
    %v736 = vpack.c.b16 %v705, %v704
    %v737 = vpack.c.b16 %v707, %v706
    %v738 = vpack.c.b16 %v709, %v708
    %v739 = vpack.c.b16 %v711, %v710
    %v740 = vpack.c.b16 %v713, %v712
    %v741 = vpack.c.b16 %v715, %v714
    %v742 = vpack.c.b16 %v717, %v716
    %v743 = vpack.c.b16 %v719, %v718
    %v744 = vpack.c.b16 %v721, %v720
    %v745 = vpack.c.b16 %v723, %v722
    %v746 = vpack.c.b16 %v725, %v724
    %v747 = vpack.c.b16 %v727, %v726
    %v748 = vpack.c.b16 %v729, %v728
    %v749 = vpack.c.b16 %v731, %v730
    %v750 = vpack.c.b16 %v733, %v732
    %v751 = vpack.c.b16 %v735, %v734
    %768 = vmatprep.subr.bf16.mxu0 0
    %769 = vmatpush1.bf16.msra.mxu0 %v736
    %770 = vmatprep.subr.bf16.mxu0 0
    %771 = vmatpush1.bf16.msra.mxu0 %v737
    %772 = vmatprep.subr.bf16.mxu0 0
    %773 = vmatpush1.bf16.msra.mxu0 %v738
    %774 = vmatprep.subr.bf16.mxu0 0
    %775 = vmatpush1.bf16.msra.mxu0 %v739
    %776 = vmatprep.subr.bf16.mxu0 0
    %777 = vmatpush1.bf16.msra.mxu0 %v740
    %778 = vmatprep.subr.bf16.mxu0 0
    %779 = vmatpush1.bf16.msra.mxu0 %v741
    %780 = vmatprep.subr.bf16.mxu0 0
    %781 = vmatpush1.bf16.msra.mxu0 %v742
    %782 = vmatprep.subr.bf16.mxu0 0
    %783 = vmatpush1.bf16.msra.mxu0 %v743
    %784 = vmatprep.subr.bf16.mxu0 0
    %785 = vmatpush1.bf16.msra.mxu0 %v744
    %786 = vmatprep.subr.bf16.mxu0 0
    %787 = vmatpush1.bf16.msra.mxu0 %v745
    %788 = vmatprep.subr.bf16.mxu0 0
    %789 = vmatpush1.bf16.msra.mxu0 %v746
    %790 = vmatprep.subr.bf16.mxu0 0
    %791 = vmatpush1.bf16.msra.mxu0 %v747
    %792 = vmatprep.subr.bf16.mxu0 0
    %793 = vmatpush1.bf16.msra.mxu0 %v748
    %794 = vmatprep.subr.bf16.mxu0 0
    %795 = vmatpush1.bf16.msra.mxu0 %v749
    %796 = vmatprep.subr.bf16.mxu0 0
    %797 = vmatpush1.bf16.msra.mxu0 %v750
    %798 = vmatprep.subr.bf16.mxu0 0
    %799 = vmatpush1.bf16.msra.mxu0 %v751
    %800 = vmatprep.mubr.bf16.mxu0 %v638
    %801 = vmatmul.mubr.bf16.gmra.mrb[0].mxu0 %v637
    %v802 = vpop.f32.mrb[0].mxu0
    %v803 = vadd.f32 %v671, %v802
    %v804 = vpop.f32.mrb[0].mxu0
    %v805 = vpop.f32.mrb[0].mxu0
    %v806 = vadd.f32 %v671, %v805
    %v807 = vpop.f32.mrb[0].mxu0
    %808 = vdwg.mxu0
    %v809 = vmax.f32 %v803, 0.0
    %v810 = vmax.f32 %v806, 0.0
    %v811 = vpack.c.bf16 %v810, %v809
    %v812 = vld [vmem:[#allocation11] sm:$0xf]
    %v813 = vld [vmem:[#allocation11 + $0x4] sm:$0xf]
    %v814 = vld [vmem:[#allocation11 + $0x8] sm:$0xf]
    %v815 = vld [vmem:[#allocation11 + $0xc] sm:$0xf]
    %v816 = vld [vmem:[#allocation11 + $0x10] sm:$0xf]
    %v817 = vld [vmem:[#allocation11 + $0x14] sm:$0xf]
    %v818 = vld [vmem:[#allocation11 + $0x18] sm:$0xf]
    %v819 = vld [vmem:[#allocation11 + $0x1c] sm:$0xf]
    %v820 = vld [vmem:[#allocation11 + $0x20] sm:$0xf]
    %v821 = vld [vmem:[#allocation11 + $0x24] sm:$0xf]
    %v822 = vld [vmem:[#allocation11 + $0x28] sm:$0xf]
    %v823 = vld [vmem:[#allocation11 + $0x2c] sm:$0xf]
    %v824 = vld [vmem:[#allocation11 + $0x30] sm:$0xf]
    %v825 = vld [vmem:[#allocation11 + $0x34] sm:$0xf]
    %v826 = vld [vmem:[#allocation11 + $0x38] sm:$0xf]
    %v827 = vld [vmem:[#allocation11 + $0x3c] sm:$0xf]
    %v828 = vld [vmem:[%s6 + $0x4] ss:$0 sm:$0xff]
    %v845 = vunpack.c.l.b16 %v812
    %v846 = vunpack.c.l.b16 %v813
    %v847 = vunpack.c.l.b16 %v814
    %v848 = vunpack.c.l.b16 %v815
    %v849 = vunpack.c.l.b16 %v816
    %v850 = vunpack.c.l.b16 %v817
    %v851 = vunpack.c.l.b16 %v818
    %v852 = vunpack.c.l.b16 %v819
    %v853 = vunpack.c.l.b16 %v820
    %v854 = vunpack.c.l.b16 %v821
    %v855 = vunpack.c.l.b16 %v822
    %v856 = vunpack.c.l.b16 %v823
    %v857 = vunpack.c.l.b16 %v824
    %v858 = vunpack.c.l.b16 %v825
    %v859 = vunpack.c.l.b16 %v826
    %v860 = vunpack.c.l.b16 %v827
    %v861 = vpack.c.b16 %v846, %v845
    %v862 = vpack.c.b16 %v848, %v847
    %v863 = vpack.c.b16 %v850, %v849
    %v864 = vpack.c.b16 %v852, %v851
    %v865 = vpack.c.b16 %v854, %v853
    %v866 = vpack.c.b16 %v856, %v855
    %v867 = vpack.c.b16 %v858, %v857
    %v868 = vpack.c.b16 %v860, %v859
    %877 = vmatprep.subr.bf16.mxu0 0
    %878 = vmatpush1.bf16.msra.mxu0 %v861
    %879 = vmatprep.subr.bf16.mxu0 0
    %880 = vmatpush1.bf16.msra.mxu0 %v862
    %881 = vmatprep.subr.bf16.mxu0 0
    %882 = vmatpush1.bf16.msra.mxu0 %v863
    %883 = vmatprep.subr.bf16.mxu0 0
    %884 = vmatpush1.bf16.msra.mxu0 %v864
    %885 = vmatprep.subr.bf16.mxu0 0
    %886 = vmatpush1.bf16.msra.mxu0 %v865
    %887 = vmatprep.subr.bf16.mxu0 0
    %888 = vmatpush1.bf16.msra.mxu0 %v866
    %889 = vmatprep.subr.bf16.mxu0 0
    %890 = vmatpush1.bf16.msra.mxu0 %v867
    %891 = vmatprep.subr.bf16.mxu0 0
    %892 = vmatpush1.bf16.msra.mxu0 %v868
    %893 = vmatprep.subr.bf16.mxu0 0
    %894 = vmatpush1.bf16.msra.mxu0 0
    %895 = vmatprep.subr.bf16.mxu0 0
    %896 = vmatpush1.bf16.msra.mxu0 0
    %897 = vmatprep.subr.bf16.mxu0 0
    %898 = vmatpush1.bf16.msra.mxu0 0
    %899 = vmatprep.subr.bf16.mxu0 0
    %900 = vmatpush1.bf16.msra.mxu0 0
    %901 = vmatprep.subr.bf16.mxu0 0
    %902 = vmatpush1.bf16.msra.mxu0 0
    %903 = vmatprep.subr.bf16.mxu0 0
    %904 = vmatpush1.bf16.msra.mxu0 0
    %905 = vmatprep.subr.bf16.mxu0 0
    %906 = vmatpush1.bf16.msra.mxu0 0
    %907 = vmatprep.subr.bf16.mxu0 0
    %908 = vmatpush1.bf16.msra.mxu0 0
    %909 = vmatprep.mubr.bf16.mxu0 0
    %910 = vmatmul.mubr.bf16.gmra.mrb[0].mxu0 %v811
    %v911 = vpop.f32.mrb[0].mxu0
    %v912 = vadd.f32 %v828, %v911
    %v913 = vpop.f32.mrb[0].mxu0
    %v914 = vpop.f32.mrb[0].mxu0
    %v915 = vadd.f32 %v828, %v914
    %v916 = vpop.f32.mrb[0].mxu0
    %917 = vdwg.mxu0
    %v918 = vpack.c.bf16 %v915, %v912
    %v920 = vunpack.c.l.b16 %v918
    %v921 = vunpack.c.h.b16 %v918
    %v922 = vpack.c.b16 %v920, %v920
    %v923 = vpack.c.b16 %v921, %v921
    %926 = vst [vmem:[#allocation13] sm:$0xf] %v922
    %927 = vst [vmem:[#allocation13 + $0x4] sm:$0xf] %v923
    // Predicated region
    $region54: #{tpu_custom_call.1} parent=1 // pred_check
      _
    $region55: #{tpu_custom_call.1} parent=1 // pred_check_branch
      %929 = sbr.rel (0) target = $region57
    $region56: #{tpu_custom_call.1} parent=1 // pred_region
      %s931 = ssub.s32 128, 128
      %932 = vsyncadd [#allocation4], %s931
      %s933 = sshll.u32 [#allocation13], 4
      %s934 = int_to_ptr.vmem [resolvable:$true] %s933
      %939 = dma.vmem_to_hbm [thread:$0]  %s934, 128, %s7, [#allocation4], 64, 64, 4
    $region57: #{tpu_custom_call.1} parent=1 // pred_fallthru
      _
    // Predicated region
    $region58: #{tpu_custom_call.1} parent=1 // pred_check
      _
    $region59: #{tpu_custom_call.1} parent=1 // pred_check_branch
      %941 = sbr.rel (0) target = $region61
    $region60: #{tpu_custom_call.1} parent=1 // pred_region
      %942 = dma.done [#allocation4], 128
    $region61: #{tpu_custom_call.1} parent=1 // pred_fallthru
      _
    %943 = vsyncpa [#allocation3], 1
    %944 = vsyncpa [#allocation6], 1
    %945 = vsyncpa [#allocation9], 1
    %946 = vsyncpa [#allocation12], 1
    %947 = vsyncpa [#allocation4], 1

</llo_original>
